<compile_context>
chip_gen: v7x
topology: tpu7x:2x2x1
jax: 0.10.0
libtpu: 0.0.40
codegen_flags: <defaults>
</compile_context>

<pallas_src>
import jax
import jax.numpy as jnp
from jax.experimental import pallas as pl
from jax.experimental.pallas import tpu as pltpu


def _alias_noop_kernel(x_ref, o_ref):
    # Output buffer is aliased to the input buffer (input_output_aliases),
    # so there is nothing to move: intentionally empty body.
    del x_ref, o_ref


def _hbm_dma_copy_kernel(x_ref, o_ref, sem):
    # Single whole-array HBM -> HBM DMA: no VMEM staging, no per-step
    # overhead, zero TensorCore work.
    cp = pltpu.make_async_copy(x_ref, o_ref, sem)
    cp.start()
    cp.wait()


def _flatten_alias(x2: jax.Array, n: int, c: int) -> jax.Array:
    return pl.pallas_call(
        _alias_noop_kernel,
        out_shape=jax.ShapeDtypeStruct((n, c), x2.dtype),
        in_specs=[pl.BlockSpec(memory_space=pl.ANY)],
        out_specs=pl.BlockSpec(memory_space=pl.ANY),
        input_output_aliases={0: 0},
        cost_estimate=pl.CostEstimate(flops=0, transcendentals=0,
                                      bytes_accessed=0),
    )(x2)


def _flatten_dma_copy(x2: jax.Array, n: int, c: int) -> jax.Array:
    nbytes = n * c * jnp.dtype(x2.dtype).itemsize
    return pl.pallas_call(
        _hbm_dma_copy_kernel,
        out_shape=jax.ShapeDtypeStruct((n, c), x2.dtype),
        in_specs=[pl.BlockSpec(memory_space=pl.ANY)],
        out_specs=pl.BlockSpec(memory_space=pl.ANY),
        scratch_shapes=[pltpu.SemaphoreType.DMA],
        cost_estimate=pl.CostEstimate(flops=0, transcendentals=0,
                                      bytes_accessed=2 * nbytes),
    )(x2)


def flatten(x: jax.Array) -> jax.Array:
    """Pallas equivalent of Flatten.forward: (N, C, 1, 1) -> (N, C)."""
    assert x.ndim == 4, f"expected NCHW input, got shape {x.shape}"
    assert x.shape[2] == x.shape[3] == 1, f"{x.shape[2]} != {x.shape[3]} != 1"
    n, c = x.shape[0], x.shape[1]

    # Zero-cost metadata squeeze of the trailing unit spatial dims; the kernel
    # never sees a (N, C, 1, 1) block (which would pad every element to a full
    # (8, 128) vreg tile).
    x2 = jnp.reshape(x, (n, c))

    # Preferred path: zero bytes moved (output aliases the input buffer).
    try:
        return _flatten_alias(x2, n, c)
    except Exception:
        # Robust fallback: one whole-array HBM->HBM DMA — still strictly
        # better than a tiled VMEM copy on every TPU generation.
        return _flatten_dma_copy(x2, n, c)


if __name__ == "__main__":
    key = jax.random.PRNGKey(0)
    k1, k2 = jax.random.split(key)

    # Case 1: small shape consistent with the module contract (H = W = 1).
    x1 = jax.random.normal(k1, (2, 4, 1, 1), dtype=jnp.float32)
    out1 = jax.block_until_ready(flatten(x1))
    ref1 = x1[:, :, 0, 0]
    assert out1.shape == (2, 4), out1.shape
    assert out1.dtype == x1.dtype
    assert jnp.array_equal(out1, ref1)

    # Case 2: larger, lane-dense C and a sub-32-bit dtype.
    x2 = jax.random.normal(k2, (16, 256, 1, 1), dtype=jnp.bfloat16)
    out2 = jax.block_until_ready(flatten(x2))
    ref2 = x2[:, :, 0, 0]
    assert out2.shape == (16, 256), out2.shape
    assert out2.dtype == x2.dtype
    assert jnp.array_equal(out2, ref2)

    print("KERNEL_OK")
</pallas_src>

<mosaic_0001>
module attributes {stable_mosaic.version = 11 : i64} {
  func.func @_alias_noop_kernel(%arg0: memref<2x4xf32, #tpu.memory_space<any>>, %arg1: memref<2x4xf32, #tpu.memory_space<any>>) attributes {dimension_semantics = [], scalar_prefetch = 0 : i64, scratch_operands = 0 : i64, tpu.core_type = #tpu.core_type<tc>} {
    return
  }
}

module attributes {stable_mosaic.version = 11 : i64} {
  func.func @_hbm_dma_copy_kernel(%arg0: memref<2x4xf32, #tpu.memory_space<any>>, %arg1: memref<2x4xf32, #tpu.memory_space<any>>, %arg2: memref<!tpu.dma_semaphore, #tpu.memory_space<semaphore_mem>>) attributes {dimension_semantics = [], scalar_prefetch = 0 : i64, scratch_operands = 1 : i64, tpu.core_type = #tpu.core_type<tc>} {
    tpu.enqueue_dma source(%arg0 : memref<2x4xf32, #tpu.memory_space<any>>) target(%arg1 : memref<2x4xf32, #tpu.memory_space<any>>) target_semaphore(%arg2 : memref<!tpu.dma_semaphore, #tpu.memory_space<semaphore_mem>>)
    tpu.wait_dma2 semaphore(%arg2 : memref<!tpu.dma_semaphore, #tpu.memory_space<semaphore_mem>>) src(%arg0 : memref<2x4xf32, #tpu.memory_space<any>>) dst(%arg1 : memref<2x4xf32, #tpu.memory_space<any>>)
    return
  }
}

</mosaic_0001>

<llo_original>
// kernel: tpu_custom_call.1
$region0: #{tpu_custom_call.1}
  #allocation0 [shape = 'u32[]', space=smem, size = 0x4, offset = 0x4, fixed_abs, tag = 'smem constant byte address 0x4 - core index']
  #allocation1 [shape = 'u32[144,128]{1,0:T(1,128)}', space=vmem, size = 0x12000, scoped, tag = 'internal scratch']
  %s0 = inlined_call_operand.hbm [shape: f32[2,4], index: 0, kind: input, shape index: {}, may-alias: {0,1}]
  %s1 = inlined_call_operand.hbm [shape: f32[2,4], index: 1, kind: output, shape index: {}, may-alias: {0,1}]
  %s2 = sld [smem:[#allocation0]]
  $region2: #{tpu_custom_call.1} parent=0
    _
  %s4 = ssub.s32 1, %s2
  %s5 = scalar_select 0, %s4, %s2

// kernel: tpu_custom_call.1
$region0: #{tpu_custom_call.1}
  #allocation0 [shape = 'u32[]', space=smem, size = 0x4, offset = 0x4, fixed_abs, tag = 'smem constant byte address 0x4 - core index']
  #allocation1 [shape = 'u32[144,128]{1,0:T(1,128)}', space=vmem, size = 0x12000, scoped, tag = 'internal scratch']
  #allocation2 [shape = 's32[1]{0}', space=sflag, size = 0x4, scoped, tag = 'scratch operand']
  #allocation3 [shape = 's32[]', space=sflag, size = 0x4, offset = 0, fixed_abs, tag = 'sflag constant byte address 0x0 - dummy sync flag']
  #allocation4 [shape = 'u32[0]{0}', space=smem, size = 0, offset = 0, fixed_abs, tag = 'smem constant byte address 0x0 - null']
  %s0 = inlined_call_operand.hbm [shape: f32[2,4], index: 0, kind: input, shape index: {}]
  %s1 = inlined_call_operand.hbm [shape: f32[2,4], index: 1, kind: output, shape index: {}]
  %s2 = sld [smem:[#allocation0]]
  $region2: #{tpu_custom_call.1} parent=0
    _
  %s4 = ssub.s32 1, %s2
  %s5 = scalar_select 0, %s4, %s2
  %s7 = sshll.u32 1, 14
  %s8 = sxor.u32 4294967295, %s7
  %s11 = sshll.u32 3, 24
  %s12 = sxor.u32 4294967295, %s11
  %s13 = sand.u32 0, %s12
  %s15 = sor.u32 %s13, 0
  %18 = dma.general %s0, 32, %s1, [#allocation2], [#allocation3], [#allocation4], %s15, 0
  %s19 = smul.u32 2, 1
  %s20 = sshll.u32 %s19, 4
  %21 = dma.done [#allocation2], %s20
  %22 = vsyncmov [#allocation2]
  %s23 = vpop.sfrf %22
  %p24 = scmp.eq.s32.totalorder %s23, 0
  %p25 = pneg %p24
  %27 = shalt.err (%p25)

</llo_original>
